<compile_context>
chip_gen: v5e
topology: v5e:2x2
jax: 0.10.0
libtpu: 0.0.40
codegen_flags: <defaults>
</compile_context>

<pallas_src>
import jax
import jax.numpy as jnp
from jax import lax
from jax.experimental import pallas as pl
from jax.experimental.pallas import tpu as pltpu

EPS = 1e-5          # InstanceNorm2d default eps
NEG_SLOPE = 0.2     # LeakyReLU negative slope


def _largest_tile(hw, cap):
    """Largest multiple-of-128 divisor of hw that is <= cap (else hw itself)."""
    best = None
    t = 128
    while t <= min(hw, cap):
        if hw % t == 0:
            best = t
        t += 128
    return best if best is not None else hw


def transpose_conv_block(x_nchw, weight, *, out_dtype=jnp.float32,
                         cout_groups=None, hw_tile=None):
    """x_nchw: (N, Cin, H, W) f32; weight: (Cin, Cout, 2, 2) (PyTorch ConvTranspose2d layout).

    Returns LeakyReLU(InstanceNorm2d(ConvTranspose2d(k=2, s=2, bias=False)(x))),
    shape (N, Cout, 2H, 2W).
    """
    N, Cin, H, W = x_nchw.shape
    assert weight.shape[0] == Cin and weight.shape[2:] == (2, 2)
    Cout = weight.shape[1]
    HW = H * W
    inv_n = 1.0 / (4.0 * HW)     # InstanceNorm averages over the full 2H x 2W plane

    # ---- Cout grouping: gives the second v7x TensorCore work when N == 1. ----
    if cout_groups is None:
        cout_groups = 2 if (N == 1 and Cout % 2 == 0 and (Cout // 2) % 8 == 0) else 1
    assert Cout % cout_groups == 0
    cg = Cout // cout_groups
    assert cout_groups == 1 or (4 * cg) % 8 == 0
    use_view = (cg % 8 == 0)     # free (4, cg, hw) sublane-aligned view for stats fold

    # ---- generation-aware VMEM budget & HW tile choice (lane-dense, fits VMEM). ----
    vmem_cap = 64 * 1024 * 1024                     # conservative default (v7x per-core)
    try:
        vmem_cap = int(getattr(pltpu.get_tpu_info(), "vmem_capacity_bytes", vmem_cap))
    except Exception:
        pass
    budget = int(0.55 * vmem_cap)
    if hw_tile is None:
        per_lane_bytes = 2 * (Cin + 4 * cg) * 4     # double-buffered x + out blocks, f32
        lane_cap = max(128, budget // per_lane_bytes)
        hw_tile = _largest_tile(HW, min(lane_cap, 8192))
    assert HW % hw_tile == 0
    n_tiles = HW // hw_tile

    need = (2 * (Cin + 4 * cg) * hw_tile * 4        # pipelined input/output blocks
            + 2 * 4 * Cout * Cin * 4                # resident weights
            + (2 << 20))                            # headroom for scratch / internals
    vmem_limit = int(min(max(need, 16 * 1024 * 1024), 0.85 * vmem_cap))

    # ---- inputs: keep NCHW order, flat HW becomes the (dense) lane axis. ----
    x_flat = x_nchw.reshape(N, Cin, HW)

    # Weight rows packed group-major, then tap (a*2+b), then channel-within-group:
    #   row = g*(4*cg) + (a*2+b)*cg + c_local
    wt = jnp.transpose(weight, (2, 3, 1, 0)).reshape(4, Cout, Cin)       # (tap, c, k)
    wt = wt.reshape(4, cout_groups, cg, Cin)
    w_flat = jnp.transpose(wt, (1, 0, 2, 3)).reshape(4 * Cout, Cin)      # (4*Cout, Cin)

    def kernel(x_ref, w_ref, o_ref, shift_ref, ssum_ref, ssq_ref):
        p = pl.program_id(2)              # 0: accumulate stats, 1: normalize + store
        t = pl.program_id(3)              # HW tile index

        x = x_ref[0]                      # (Cin, hw_tile)
        w = w_ref[...]                    # (4*cg, Cin)
        # Fused transpose-conv: one MXU matmul for all 4 taps of this Cout group.
        y = jnp.dot(w, x, preferred_element_type=jnp.float32,
                    precision=lax.Precision.HIGHEST)                     # (4*cg, hw_tile)
        if use_view:
            y = y.reshape(4, cg, hw_tile)          # free: cg % 8 == 0 (tile-aligned)

        def _fold(v):
            # per-output-channel sum over taps + lanes -> (cg, 1)
            if use_view:
                return jnp.sum(jnp.sum(v, axis=2, keepdims=True), axis=0)
            rs = jnp.sum(v, axis=1, keepdims=True)                        # (4*cg, 1)
            return rs[0:cg] + rs[cg:2 * cg] + rs[2 * cg:3 * cg] + rs[3 * cg:4 * cg]

        def _rows(s):
            # broadcastable per-row view of (cg, 1) per-channel stats
            return s if use_view else jnp.concatenate([s, s, s, s], axis=0)

        # ---- pass 0: accumulate shifted per-channel sums / sums of squares ----
        @pl.when(p == 0)
        def _():
            @pl.when(t == 0)
            def _():
                # shift = first-tile channel mean; keeps E[d^2]-E[d]^2 well conditioned.
                shift_ref[...] = _fold(y) * (1.0 / (4.0 * hw_tile))
                ssum_ref[...] = jnp.zeros_like(ssum_ref)
                ssq_ref[...] = jnp.zeros_like(ssq_ref)

            d = y - _rows(shift_ref[...])
            ssum_ref[...] += _fold(d)
            ssq_ref[...] += _fold(d * d)

        # ---- pass 1: normalize + LeakyReLU, single lane-dense store per tile ----
        @pl.when(p == 1)
        def _():
            m1 = ssum_ref[...] * inv_n
            mean = shift_ref[...] + m1
            var = ssq_ref[...] * inv_n - m1 * m1
            inv_std = lax.rsqrt(var + EPS)

            yn = (y - _rows(mean)) * _rows(inv_std)
            out = jnp.where(yn >= 0, yn, NEG_SLOPE * yn)
            if use_view:
                out = out.reshape(4 * cg, hw_tile)
            o_ref[0] = out.astype(o_ref.dtype)

    out = pl.pallas_call(
        kernel,
        out_shape=jax.ShapeDtypeStruct((N, 4 * Cout, HW), out_dtype),
        grid_spec=pltpu.PrefetchScalarGridSpec(
            num_scalar_prefetch=0,
            grid=(N, cout_groups, 2, n_tiles),
            in_specs=[
                # x tile: re-streamed for each (group, pass); lanes = hw_tile (dense).
                pl.BlockSpec((1, Cin, hw_tile), lambda n, g, p, t: (n, 0, t)),
                # weights: constant over (pass, tile) -> stay resident per group.
                pl.BlockSpec((4 * cg, Cin), lambda n, g, p, t: (g, 0)),
            ],
            # During pass 0 (p == 0) the index is pinned to the block pass 1 writes
            # first, so the (unwritten) buffer is never flushed and every output block
            # is written to HBM exactly once.
            out_specs=pl.BlockSpec((1, 4 * cg, hw_tile),
                                   lambda n, g, p, t: (n, g, p * t)),
            scratch_shapes=[
                pltpu.VMEM((cg, 1), jnp.float32),   # shift (first-tile channel mean)
                pltpu.VMEM((cg, 1), jnp.float32),   # sum(y - shift)
                pltpu.VMEM((cg, 1), jnp.float32),   # sum((y - shift)^2)
            ],
        ),
        compiler_params=pltpu.CompilerParams(
            dimension_semantics=("parallel", "parallel", "arbitrary", "arbitrary"),
            vmem_limit_bytes=vmem_limit,
        ),
    )(x_flat, w_flat)

    # Leftover XLA depth-to-space (see TODO at top):
    # row g*(4*cg) + (a*2+b)*cg + c, pixel i*W + j  ->  out[n, g*cg + c, 2i+a, 2j+b].
    o7 = out.reshape(N, cout_groups, 2, 2, cg, H, W)      # (n, g, a, b, c, i, j)
    o7 = jnp.transpose(o7, (0, 1, 4, 5, 2, 6, 3))         # (n, g, c, i, a, j, b)
    return o7.reshape(N, Cout, 2 * H, 2 * W)


def _reference(x_nchw, weight):
    # Pure-JAX reference for sanity checking.
    y = jnp.einsum("ncij,cdab->ndiajb", x_nchw, weight)   # (N, Cout, H, 2, W, 2)
    N, Cout, H, _, W, _ = y.shape
    y = y.reshape(N, Cout, 2 * H, 2 * W)
    mean = jnp.mean(y, axis=(2, 3), keepdims=True)
    var = jnp.mean((y - mean) ** 2, axis=(2, 3), keepdims=True)
    yn = (y - mean) * lax.rsqrt(var + EPS)
    return jnp.where(yn >= 0, yn, NEG_SLOPE * yn)


if __name__ == "__main__":
    key = jax.random.PRNGKey(0)
    kx, kw = jax.random.split(key)

    N, Cin, Cout, H, W = 2, 4, 8, 16, 16
    x = jax.random.normal(kx, (N, Cin, H, W), dtype=jnp.float32)
    # ConvTranspose2d weight shape in PyTorch: (in_channels, out_channels, kH, kW)
    weight = jax.random.normal(kw, (Cin, Cout, 2, 2), dtype=jnp.float32) * 0.1

    out = transpose_conv_block(x, weight)
    out = jax.block_until_ready(out)

    ref = _reference(x, weight)
    assert out.shape == (N, Cout, 2 * H, 2 * W)
    err = float(jnp.max(jnp.abs(out - ref)))
    assert jnp.allclose(out, ref, atol=1e-4, rtol=1e-4), f"max abs err {err}"

    print("KERNEL_OK")
</pallas_src>

<mosaic_0001>
module attributes {stable_mosaic.version = 11 : i64} {
  func.func @kernel(%arg0: i32, %arg1: i32, %arg2: i32, %arg3: i32, %arg4: memref<1x4x256xf32, #tpu.memory_space<vmem>>, %arg5: memref<32x4xf32, #tpu.memory_space<vmem>>, %arg6: memref<1x32x256xf32, #tpu.memory_space<vmem>>, %arg7: memref<8x1xf32, #tpu.memory_space<vmem>>, %arg8: memref<8x1xf32, #tpu.memory_space<vmem>>, %arg9: memref<8x1xf32, #tpu.memory_space<vmem>>) attributes {dimension_semantics = [#tpu.dimension_semantics<parallel>, #tpu.dimension_semantics<parallel>, #tpu.dimension_semantics<arbitrary>, #tpu.dimension_semantics<arbitrary>], iteration_bounds = array<i64: 2, 1, 2, 1>, scalar_prefetch = 0 : i64, scratch_operands = 3 : i64, tpu.core_type = #tpu.core_type<tc>, window_params = [{transform_indices = @transform_0, window_bounds = array<i64: 1, 4, 256>}, {transform_indices = @transform_1, window_bounds = array<i64: 32, 4>}, {transform_indices = @transform_2, window_bounds = array<i64: 1, 32, 256>}]} {
    %c0 = arith.constant 0 : index
    %c0_0 = arith.constant 0 : index
    %c0_1 = arith.constant 0 : index
    %0 = vector.load %arg4[%c0, %c0_0, %c0_1] : memref<1x4x256xf32, #tpu.memory_space<vmem>>, vector<1x4x256xf32>
    %1 = vector.shape_cast %0 : vector<1x4x256xf32> to vector<4x256xf32>
    %c0_2 = arith.constant 0 : index
    %c0_3 = arith.constant 0 : index
    %2 = vector.load %arg5[%c0_2, %c0_3] : memref<32x4xf32, #tpu.memory_space<vmem>>, vector<32x4xf32>
    %cst = arith.constant dense<0.000000e+00> : vector<32x256xf32>
    %3 = tpu.matmul %2, %1, %cst {dimension_numbers = #tpu.dot_dimension_numbers<[1], [0], [0], [1], [0, 0, 1, 1], [], []>, precision = #tpu.contract_precision<fp32>} : vector<32x4xf32>, vector<4x256xf32>, vector<32x256xf32> -> vector<32x256xf32>
    %4 = vector.shape_cast %3 : vector<32x256xf32> to vector<4x8x256xf32>
    %c0_i32 = arith.constant 0 : i32
    %5 = arith.cmpi eq, %arg2, %c0_i32 : i32
    %6 = arith.extui %5 : i1 to i32
    %c0_i32_4 = arith.constant 0 : i32
    %7 = arith.cmpi ne, %6, %c0_i32_4 : i32
    scf.if %7 {
      %c0_i32_6 = arith.constant 0 : i32
      %11 = arith.cmpi eq, %arg3, %c0_i32_6 : i32
      %12 = arith.extui %11 : i1 to i32
      %c0_i32_7 = arith.constant 0 : i32
      %13 = arith.cmpi ne, %12, %c0_i32_7 : i32
      scf.if %13 {
        %cst_22 = arith.constant dense<0.000000e+00> : vector<4x8xf32>
        %31 = vector.multi_reduction <add>, %4, %cst_22 [2] : vector<4x8x256xf32> to vector<4x8xf32>
        %32 = vector.shape_cast %31 : vector<4x8xf32> to vector<4x8x1xf32>
        %cst_23 = arith.constant dense<0.000000e+00> : vector<8x1xf32>
        %33 = vector.multi_reduction <add>, %32, %cst_23 [0] : vector<4x8x1xf32> to vector<8x1xf32>
        %cst_24 = arith.constant 9.765625E-4 : f32
        %34 = vector.broadcast %cst_24 : f32 to vector<8x1xf32>
        %35 = arith.mulf %33, %34 : vector<8x1xf32>
        %c0_25 = arith.constant 0 : index
        %c0_26 = arith.constant 0 : index
        %36 = vector.load %arg7[%c0_25, %c0_26] : memref<8x1xf32, #tpu.memory_space<vmem>>, vector<8x1xf32>
        tpu.vector_store %arg7[%c0_25, %c0_26], %35 {strides = array<i32>} : memref<8x1xf32, #tpu.memory_space<vmem>>, vector<8x1xf32>,
        %cst_27 = arith.constant 0.000000e+00 : f32
        %37 = vector.broadcast %cst_27 : f32 to vector<8x1xf32>
        %c0_28 = arith.constant 0 : index
        %c0_29 = arith.constant 0 : index
        %38 = vector.load %arg8[%c0_28, %c0_29] : memref<8x1xf32, #tpu.memory_space<vmem>>, vector<8x1xf32>
        tpu.vector_store %arg8[%c0_28, %c0_29], %37 {strides = array<i32>} : memref<8x1xf32, #tpu.memory_space<vmem>>, vector<8x1xf32>,
        %cst_30 = arith.constant 0.000000e+00 : f32
        %39 = vector.broadcast %cst_30 : f32 to vector<8x1xf32>
        %c0_31 = arith.constant 0 : index
        %c0_32 = arith.constant 0 : index
        %40 = vector.load %arg9[%c0_31, %c0_32] : memref<8x1xf32, #tpu.memory_space<vmem>>, vector<8x1xf32>
        tpu.vector_store %arg9[%c0_31, %c0_32], %39 {strides = array<i32>} : memref<8x1xf32, #tpu.memory_space<vmem>>, vector<8x1xf32>,
      } else {
      }
      %c0_8 = arith.constant 0 : index
      %c0_9 = arith.constant 0 : index
      %14 = vector.load %arg7[%c0_8, %c0_9] : memref<8x1xf32, #tpu.memory_space<vmem>>, vector<8x1xf32>
      %15 = vector.shape_cast %14 : vector<8x1xf32> to vector<1x8x1xf32>
      %16 = vector.broadcast %15 : vector<1x8x1xf32> to vector<4x8x256xf32>
      %17 = arith.subf %4, %16 : vector<4x8x256xf32>
      %c0_10 = arith.constant 0 : index
      %c0_11 = arith.constant 0 : index
      %18 = vector.load %arg8[%c0_10, %c0_11] : memref<8x1xf32, #tpu.memory_space<vmem>>, vector<8x1xf32>
      %cst_12 = arith.constant dense<0.000000e+00> : vector<4x8xf32>
      %19 = vector.multi_reduction <add>, %17, %cst_12 [2] : vector<4x8x256xf32> to vector<4x8xf32>
      %20 = vector.shape_cast %19 : vector<4x8xf32> to vector<4x8x1xf32>
      %cst_13 = arith.constant dense<0.000000e+00> : vector<8x1xf32>
      %21 = vector.multi_reduction <add>, %20, %cst_13 [0] : vector<4x8x1xf32> to vector<8x1xf32>
      %22 = arith.addf %18, %21 : vector<8x1xf32>
      %c0_14 = arith.constant 0 : index
      %c0_15 = arith.constant 0 : index
      %23 = vector.load %arg8[%c0_14, %c0_15] : memref<8x1xf32, #tpu.memory_space<vmem>>, vector<8x1xf32>
      tpu.vector_store %arg8[%c0_14, %c0_15], %22 {strides = array<i32>} : memref<8x1xf32, #tpu.memory_space<vmem>>, vector<8x1xf32>,
      %c0_16 = arith.constant 0 : index
      %c0_17 = arith.constant 0 : index
      %24 = vector.load %arg9[%c0_16, %c0_17] : memref<8x1xf32, #tpu.memory_space<vmem>>, vector<8x1xf32>
      %25 = arith.mulf %17, %17 : vector<4x8x256xf32>
      %cst_18 = arith.constant dense<0.000000e+00> : vector<4x8xf32>
      %26 = vector.multi_reduction <add>, %25, %cst_18 [2] : vector<4x8x256xf32> to vector<4x8xf32>
      %27 = vector.shape_cast %26 : vector<4x8xf32> to vector<4x8x1xf32>
      %cst_19 = arith.constant dense<0.000000e+00> : vector<8x1xf32>
      %28 = vector.multi_reduction <add>, %27, %cst_19 [0] : vector<4x8x1xf32> to vector<8x1xf32>
      %29 = arith.addf %24, %28 : vector<8x1xf32>
      %c0_20 = arith.constant 0 : index
      %c0_21 = arith.constant 0 : index
      %30 = vector.load %arg9[%c0_20, %c0_21] : memref<8x1xf32, #tpu.memory_space<vmem>>, vector<8x1xf32>
      tpu.vector_store %arg9[%c0_20, %c0_21], %29 {strides = array<i32>} : memref<8x1xf32, #tpu.memory_space<vmem>>, vector<8x1xf32>,
    } else {
    }
    %c1_i32 = arith.constant 1 : i32
    %8 = arith.cmpi eq, %arg2, %c1_i32 : i32
    %9 = arith.extui %8 : i1 to i32
    %c0_i32_5 = arith.constant 0 : i32
    %10 = arith.cmpi ne, %9, %c0_i32_5 : i32
    scf.if %10 {
      %c0_6 = arith.constant 0 : index
      %c0_7 = arith.constant 0 : index
      %11 = vector.load %arg8[%c0_6, %c0_7] : memref<8x1xf32, #tpu.memory_space<vmem>>, vector<8x1xf32>
      %cst_8 = arith.constant 9.765625E-4 : f32
      %12 = vector.broadcast %cst_8 : f32 to vector<8x1xf32>
      %13 = arith.mulf %11, %12 : vector<8x1xf32>
      %c0_9 = arith.constant 0 : index
      %c0_10 = arith.constant 0 : index
      %14 = vector.load %arg7[%c0_9, %c0_10] : memref<8x1xf32, #tpu.memory_space<vmem>>, vector<8x1xf32>
      %15 = arith.addf %14, %13 : vector<8x1xf32>
      %c0_11 = arith.constant 0 : index
      %c0_12 = arith.constant 0 : index
      %16 = vector.load %arg9[%c0_11, %c0_12] : memref<8x1xf32, #tpu.memory_space<vmem>>, vector<8x1xf32>
      %cst_13 = arith.constant 9.765625E-4 : f32
      %17 = vector.broadcast %cst_13 : f32 to vector<8x1xf32>
      %18 = arith.mulf %16, %17 : vector<8x1xf32>
      %19 = arith.mulf %13, %13 : vector<8x1xf32>
      %20 = arith.subf %18, %19 : vector<8x1xf32>
      %cst_14 = arith.constant 9.99999974E-6 : f32
      %21 = vector.broadcast %cst_14 : f32 to vector<8x1xf32>
      %22 = arith.addf %20, %21 : vector<8x1xf32>
      %23 = math.rsqrt %22 : vector<8x1xf32>
      %24 = vector.shape_cast %15 : vector<8x1xf32> to vector<1x8x1xf32>
      %25 = vector.broadcast %24 : vector<1x8x1xf32> to vector<4x8x256xf32>
      %26 = arith.subf %4, %25 : vector<4x8x256xf32>
      %27 = vector.shape_cast %23 : vector<8x1xf32> to vector<1x8x1xf32>
      %28 = vector.broadcast %27 : vector<1x8x1xf32> to vector<4x8x256xf32>
      %29 = arith.mulf %26, %28 : vector<4x8x256xf32>
      %cst_15 = arith.constant 0.000000e+00 : f32
      %30 = vector.broadcast %cst_15 : f32 to vector<4x8x256xf32>
      %31 = arith.cmpf oge, %29, %30 : vector<4x8x256xf32>
      %cst_16 = arith.constant 2.000000e-01 : f32
      %32 = vector.broadcast %cst_16 : f32 to vector<4x8x256xf32>
      %33 = arith.mulf %32, %29 : vector<4x8x256xf32>
      %34 = arith.select %31, %29, %33 : vector<4x8x256xi1>, vector<4x8x256xf32>
      %35 = vector.shape_cast %34 : vector<4x8x256xf32> to vector<32x256xf32>
      %c0_17 = arith.constant 0 : index
      %c0_18 = arith.constant 0 : index
      %c0_19 = arith.constant 0 : index
      %36 = vector.load %arg6[%c0_17, %c0_18, %c0_19] : memref<1x32x256xf32, #tpu.memory_space<vmem>>, vector<1x32x256xf32>
      %37 = vector.shape_cast %36 : vector<1x32x256xf32> to vector<32x256xf32>
      %38 = vector.shape_cast %35 : vector<32x256xf32> to vector<1x32x256xf32>
      tpu.vector_store %arg6[%c0_17, %c0_18, %c0_19], %38 {strides = array<i32>} : memref<1x32x256xf32, #tpu.memory_space<vmem>>, vector<1x32x256xf32>,
    } else {
    }
    return
  }
  func.func @transform_0(%arg0: i32, %arg1: i32, %arg2: i32, %arg3: i32) -> (i32, i32, i32) {
    %c0_i32 = arith.constant 0 : i32
    %c0_i32_0 = arith.constant 0 : i32
    return %arg0, %c0_i32, %arg3 : i32, i32, i32
  }
  func.func @transform_1(%arg0: i32, %arg1: i32, %arg2: i32, %arg3: i32) -> (i32, i32) {
    %c0_i32 = arith.constant 0 : i32
    %c0_i32_0 = arith.constant 0 : i32
    return %arg1, %c0_i32 : i32, i32
  }
  func.func @transform_2(%arg0: i32, %arg1: i32, %arg2: i32, %arg3: i32) -> (i32, i32, i32) {
    %0 = arith.muli %arg2, %arg3 : i32
    %c0_i32 = arith.constant 0 : i32
    return %arg0, %arg1, %0 : i32, i32, i32
  }
}

</mosaic_0001>

<llo_original>
// kernel: tpu_custom_call.1
$region0: #{tpu_custom_call.1}
  #allocation0 [shape = 'u32[]', space=smem, size = 0x4, offset = 0x4, fixed_abs, tag = 'smem constant byte address 0x4 - core index']
  #allocation1 [shape = 'u32[72,128]{1,0:T(1,128)}', space=vmem, size = 0x9000, scoped, tag = 'internal scratch']
  #allocation2 [shape = 'f32[8,1]{1,0:T(8,128)}', space=vmem, size = 0x1000, scoped, tag = 'scratch operand']
  #allocation3 [shape = 'f32[8,1]{1,0:T(8,128)}', space=vmem, size = 0x1000, scoped, tag = 'scratch operand']
  #allocation4 [shape = 'f32[8,1]{1,0:T(8,128)}', space=vmem, size = 0x1000, scoped, tag = 'scratch operand']
  %s0 = inlined_call_operand.vmem [shape: f32[2,4,256], index: 0, kind: input, shape index: {}]
  %s1 = inlined_call_operand.vmem [shape: f32[32,4], index: 1, kind: input, shape index: {}]
  %s2 = inlined_call_operand.hbm [shape: f32[2,32,256], index: 2, kind: output, shape index: {}]
  %s3 = sld [smem:[#allocation0]]
  $region53: #{tpu_custom_call.1} parent=0
    _
  %s5 = ssub.s32 1, %s3
  %s6 = scalar_select 0, %s5, %s3
  $region1: #{tpu_custom_call.1} parent=0
    #allocation5 [shape = 'u8[65536]{0}', space=vmem, size = 0x10000, scoped, tag = 'output window, operand 0']
    #allocation6 [shape = 's32[2]{0}', space=sflag, size = 0x8, scoped, tag = 'scoped memory for tpu_custom_call.1']
    %7 = vsyncpa [#allocation6], 0
    %s8 = scalar_lea.sflag [#allocation6], 1
    %9 = vsyncpa %s8, 0
    loop: start=0, step=1, limit=6
    $region2: #{tpu_custom_call.1} parent=1 // loop_pre_header
      _
    $region3: #{tpu_custom_call.1} parent=1 // loop_header
      %s11 = sphi 0, %s15
      %p12 = scmp.ge.s32.totalorder %s11, 6
      %s18 = sphi 0, %s44
      %s19 = sphi 0, %s40
      %s20 = sphi 0, %s36
      %s21 = sphi 0, %s32
      %s22 = sphi 0, %s18
      %s23 = sphi 0, %s19
      %s24 = sphi 0, %s20
      %s25 = sphi 0, %s21
      %s26 = sphi 0, %s22
      %s27 = sphi 0, %s23
      %s28 = sphi 0, %s24
      %s29 = sphi 0, %s25
      %s49 = sphi 0, %s51
      %s52 = sphi 0, %s49
      %s53 = sphi 0, %s52
      %s69 = sphi 0, %s53
      %s75 = sphi 0, %s77
      %s78 = sphi 0, %s75
      %s79 = sphi 0, %s78
      %s95 = sphi 0, %s79
      %s107 = sphi 0, %s109
      %s110 = sphi 0, %s107
      %s111 = sphi 0, %s110
      %s127 = sphi 0, %s111
    $region4: #{tpu_custom_call.1} parent=1 // loop_header_branch
      %14 = sbr.rel (%p12) target = $region8
    $region5: #{tpu_custom_call.1} parent=1 // loop_body
      %s16 = ssub.s32 %s11, 1
      %s17 = ssub.s32 %s11, 2
      %s30 = sadd.s32 1, %s21
      %p31 = scmp.ge.s32.totalorder %s30, 1
      %s32 = scalar_select %p31, 0, %s30
      %s33 = sadd.s32 1, %s20
      %s34 = scalar_select %p31, %s33, %s20
      %p35 = scmp.ge.s32.totalorder %s34, 2
      %s36 = scalar_select %p35, 0, %s34
      %s37 = sadd.s32 1, %s19
      %s38 = scalar_select %p35, %s37, %s19
      %p39 = scmp.ge.s32.totalorder %s38, 1
      %s40 = scalar_select %p39, 0, %s38
      %s41 = sadd.s32 1, %s18
      %s42 = scalar_select %p39, %s41, %s18
      %p43 = scmp.ge.s32.totalorder %s42, 2
      %s44 = scalar_select %p43, 0, %s42
      %s45 = ssub.s32 %s18, %s44
      %s46 = ssub.s32 %s21, %s32
      %s47 = sor.u32 %s45, %s46
      %p48 = scmp.eq.s32.totalorder %s47, 0
      %s50 = sadd.s32 %s49, 1
      %s51 = scalar_select %p48, %s49, %s50
      %p54 = pneg %p48
      %p55 = scmp.eq.s32.totalorder %s11, 3
      %p56 = por %p54, %p55
      %p57 = scmp.ne.s32.totalorder %s49, %s52
      %p58 = scmp.eq.s32.totalorder %s11, 0
      %p59 = por %p57, %p58
      %p60 = scmp.ne.s32.totalorder %s49, %s52
      %p61 = scmp.eq.s32.totalorder %s16, 3
      %p62 = por %p60, %p61
      %p63 = scmp.ne.s32.totalorder %s52, %s53
      %p64 = scmp.eq.s32.totalorder %s16, 0
      %p65 = por %p63, %p64
      %p66 = scmp.ne.s32.totalorder %s52, %s53
      %p67 = scmp.eq.s32.totalorder %s17, 3
      %p68 = por %p66, %p67
      %p70 = scmp.ne.s32.totalorder %s53, %s69
      %p71 = scmp.eq.s32.totalorder %s17, 0
      %p72 = por %p70, %p71
      %s73 = ssub.s32 %s19, %s40
      %p74 = scmp.eq.s32.totalorder %s73, 0
      %s76 = sadd.s32 %s75, 1
      %s77 = scalar_select %p74, %s75, %s76
      %p80 = pneg %p74
      %p81 = scmp.eq.s32.totalorder %s11, 3
      %p82 = por %p80, %p81
      %p83 = scmp.ne.s32.totalorder %s75, %s78
      %p84 = scmp.eq.s32.totalorder %s11, 0
      %p85 = por %p83, %p84
      %p86 = scmp.ne.s32.totalorder %s75, %s78
      %p87 = scmp.eq.s32.totalorder %s16, 3
      %p88 = por %p86, %p87
      %p89 = scmp.ne.s32.totalorder %s78, %s79
      %p90 = scmp.eq.s32.totalorder %s16, 0
      %p91 = por %p89, %p90
      %p92 = scmp.ne.s32.totalorder %s78, %s79
      %p93 = scmp.eq.s32.totalorder %s17, 3
      %p94 = por %p92, %p93
      %p96 = scmp.ne.s32.totalorder %s79, %s95
      %p97 = scmp.eq.s32.totalorder %s17, 0
      %p98 = por %p96, %p97
      %s99 = smul.u32 %s20, %s21
      %s100 = smul.u32 %s36, %s32
      %s101 = ssub.s32 %s18, %s44
      %s102 = ssub.s32 %s19, %s40
      %s103 = sor.u32 %s101, %s102
      %s104 = ssub.s32 %s99, %s100
      %s105 = sor.u32 %s103, %s104
      %p106 = scmp.eq.s32.totalorder %s105, 0
      %s108 = sadd.s32 %s107, 1
      %s109 = scalar_select %p106, %s107, %s108
      %p112 = pneg %p106
      %p113 = scmp.eq.s32.totalorder %s11, 3
      %p114 = por %p112, %p113
      %p115 = scmp.ne.s32.totalorder %s107, %s110
      %p116 = scmp.eq.s32.totalorder %s11, 0
      %p117 = por %p115, %p116
      %p118 = scmp.ne.s32.totalorder %s107, %s110
      %p119 = scmp.eq.s32.totalorder %s16, 3
      %p120 = por %p118, %p119
      %p121 = scmp.ne.s32.totalorder %s110, %s111
      %p122 = scmp.eq.s32.totalorder %s16, 0
      %p123 = por %p121, %p122
      %p124 = scmp.ne.s32.totalorder %s110, %s111
      %p125 = scmp.eq.s32.totalorder %s17, 3
      %p126 = por %p124, %p125
      %p128 = scmp.ne.s32.totalorder %s111, %s127
      %p129 = scmp.eq.s32.totalorder %s17, 0
      %p130 = por %p128, %p129
      %p131 = scmp.le.s32.totalorder 1, %s11
      %p132 = scmp.lt.s32.totalorder %s11, 5
      %p133 = pnand %p131, %p132
      %p134 = pneg %p133
      // Predicated region
      $region9: #{tpu_custom_call.1} parent=5 // pred_check
        _
      $region10: #{tpu_custom_call.1} parent=5 // pred_check_branch
        %136 = sbr.rel (%p133) target = $region12
      $region11: #{tpu_custom_call.1} parent=5 // pred_region
        %s137 = ssub.s32 %s11, 1
        // Predicated region
        $region13: #{tpu_custom_call.1} parent=11 // pred_check
          %p138 = pneg %p91
        $region14: #{tpu_custom_call.1} parent=11 // pred_check_branch
          %140 = sbr.rel (%p138) target = $region16
        $region15: #{tpu_custom_call.1} parent=11 // pred_region
          %s141 = smul.u32 4, %s23
          %p142 = scmp.lt.s32.totalorder %s141, 3
          %s143 = scalar_select %p142, %s141, 3
          %s144 = smul.addr %s143, 8
          %s145 = scalar_lea.vmem %s1, %s144
          %s146 = smul.u32 4, %s23
        $region16: #{tpu_custom_call.1} parent=11 // pred_fallthru
          _
      $region12: #{tpu_custom_call.1} parent=5 // pred_fallthru
        _
      %p147 = scmp.lt.s32.totalorder %s11, 4
      // Predicated region
      $region17: #{tpu_custom_call.1} parent=5 // pred_check
        %p148 = pneg %p147
      $region18: #{tpu_custom_call.1} parent=5 // pred_check_branch
        %150 = sbr.rel (%p148) target = $region20
      $region19: #{tpu_custom_call.1} parent=5 // pred_region
        // Predicated region
        $region21: #{tpu_custom_call.1} parent=19 // pred_check
          %p151 = pneg %p59
        $region22: #{tpu_custom_call.1} parent=19 // pred_check_branch
          %153 = sbr.rel (%p151) target = $region24
        $region23: #{tpu_custom_call.1} parent=19 // pred_region
          %s154 = smul.u32 2, %s21
          %p155 = scmp.lt.s32.totalorder %s18, 1
          %s156 = scalar_select %p155, %s18, 1
          %p157 = scmp.lt.s32.totalorder %s154, 1
          %s158 = scalar_select %p157, %s154, 1
          %s159 = smul.addr %s156, 2
          %s160 = sadd.s32 %s158, %s159
          %s161 = smul.addr %s160, 4
          %s162 = scalar_lea.vmem %s0, %s161
          %s163 = smul.u32 2, %s21
        $region24: #{tpu_custom_call.1} parent=19 // pred_fallthru
          _
      $region20: #{tpu_custom_call.1} parent=5 // pred_fallthru
        _
      %p164 = scmp.le.s32.totalorder 1, %s11
      %p165 = scmp.lt.s32.totalorder %s11, 5
      %p166 = pnand %p164, %p165
      %p167 = pneg %p166
      // Predicated region
      $region25: #{tpu_custom_call.1} parent=5 // pred_check
        _
      $region26: #{tpu_custom_call.1} parent=5 // pred_check_branch
        %169 = sbr.rel (%p166) target = $region28
      $region27: #{tpu_custom_call.1} parent=5 // pred_region
        %s170 = ssub.s32 %s11, 1
        %s171 = smul.u32 2, %s25
        %p172 = scmp.lt.s32.totalorder %s22, 1
        %s173 = scalar_select %p172, %s22, 1
        %p174 = scmp.lt.s32.totalorder %s171, 1
        %s175 = scalar_select %p174, %s171, 1
        %s176 = smul.addr %s173, 2
        %s177 = sadd.s32 %s175, %s176
        %s178 = smul.addr %s177, 4
        %s179 = scalar_lea.vmem %s0, %s178
        %p180 = pneg %p65
        %p181 = pneg %p62
        %s182 = smul.u32 4, %s23
        %p183 = scmp.lt.s32.totalorder %s182, 3
        %s184 = scalar_select %p183, %s182, 3
        %s185 = smul.addr %s184, 8
        %s186 = scalar_lea.vmem %s1, %s185
        %p187 = pneg %p91
        %p188 = pneg %p88
        %p189 = pneg %p123
        %p190 = pneg %p120
        %s191 = sand.u32 %s110, 1
        %s192 = scalar_lea.sflag [#allocation6], %s191
        %s193 = sand.u32 %s110, 1
        %s194 = smul.addr %s193, 64
        %s195 = scalar_lea.vmem [#allocation5], %s194
        %s196 = smul.u32 2, %s25
        %p197 = scmp.lt.s32.totalorder %s22, 1
        %s198 = scalar_select %p197, %s22, 1
        %p199 = scmp.lt.s32.totalorder %s196, 1
        %s200 = scalar_select %p199, %s196, 1
        %s201 = smul.addr %s198, 2
        %s202 = sadd.s32 %s200, %s201
        %s203 = smul.addr %s202, 4
        %s204 = scalar_lea.vmem %s0, %s203
        %s205 = smul.u32 2, %s25
        %s206 = smul.u32 4, %s23
        %p207 = scmp.lt.s32.totalorder %s206, 3
        %s208 = scalar_select %p207, %s206, 3
        %s209 = smul.addr %s208, 8
        %s210 = scalar_lea.vmem %s1, %s209
        %s211 = smul.u32 4, %s23
        %s212 = smul.u32 %s24, %s25
        %s213 = smul.u32 4, %s23
        %s214 = smul.u32 2, %s212
        %v215 = vld [vmem:[%s204] sm:$0xff]
        %v216 = vld [vmem:[%s210] sm:$0xff]
        %v217 = vld [vmem:[%s210 + $0x8] sm:$0xff]
        %v218 = vld [vmem:[%s210 + $0x10] sm:$0xff]
        %v219 = vld [vmem:[%s210 + $0x18] sm:$0xff]
        %221 = vst [vmem:[#allocation1] ss:$2 sm:$0xff] %v215
        %v222 = vld.sshfl [vmem:[#allocation1] sm:$0xff pattern:$0x75316420]
        %v223 = vld.sshfl [vmem:[#allocation1 + $0x8] sm:$0xff pattern:$0x75316420]
        %vm224 = vcmask 31744
        %v226 = vsel %vm224, %v216, 0
        %v229 = vsel %vm224, %v217, 0
        %v232 = vsel %vm224, %v218, 0
        %v235 = vsel %vm224, %v219, 0
        %vm237 = vcmask 1043456
        %v238 = vsel %vm237, %v222, 0
        %v240 = vsel %vm237, %v223, 0
        %242 = vmatpush.msra.mxu0 0.0
        %243 = vmatpush.msra.mxu0 0.0
        %244 = vmatpush.msra.mxu0 0.0
        %245 = vmatpush.msra.mxu0 0.0
        %246 = vmatpush.msra.mxu0 0.0
        %247 = vmatpush.msra.mxu0 0.0
        %248 = vmatpush.msra.mxu0 0.0
        %249 = vmatpush.msra.mxu0 0.0
        %250 = vmatpush.msra.mxu0 0.0
        %251 = vmatpush.msra.mxu0 0.0
        %252 = vmatpush.msra.mxu0 0.0
        %253 = vmatpush.msra.mxu0 0.0
        %254 = vmatpush.msra.mxu0 0.0
        %255 = vmatpush.msra.mxu0 0.0
        %256 = vmatpush.msra.mxu0 0.0
        %v257 = vand.u32 %v238, 4294901760
        %258 = vmatpush.msra.mxu0 %v257
        %v259 = vand.u32 %v226, 4294901760
        %v260 = vsub.f32 %v226, %v259
        %v261 = vand.u32 %v260, 4294901760
        %v262 = vsub.f32 %v260, %v261
        %v263 = vand.u32 %v262, 4294901760
        %264 = vmatmul.f32.gmra.mxu0 %v263
        %v265 = vpop.f32.mrf.mxu0
        %v266 = vadd.f32 0.0, %v265
        %v267 = vand.u32 %v229, 4294901760
        %v268 = vsub.f32 %v229, %v267
        %v269 = vand.u32 %v268, 4294901760
        %v270 = vsub.f32 %v268, %v269
        %v271 = vand.u32 %v270, 4294901760
        %272 = vmatmul.f32.gmra.mxu0 %v271
        %v273 = vpop.f32.mrf.mxu0
        %v274 = vadd.f32 0.0, %v273
        %v275 = vand.u32 %v232, 4294901760
        %v276 = vsub.f32 %v232, %v275
        %v277 = vand.u32 %v276, 4294901760
        %v278 = vsub.f32 %v276, %v277
        %v279 = vand.u32 %v278, 4294901760
        %280 = vmatmul.f32.gmra.mxu0 %v279
        %v281 = vpop.f32.mrf.mxu0
        %v282 = vadd.f32 0.0, %v281
        %v283 = vand.u32 %v235, 4294901760
        %v284 = vsub.f32 %v235, %v283
        %v285 = vand.u32 %v284, 4294901760
        %v286 = vsub.f32 %v284, %v285
        %v287 = vand.u32 %v286, 4294901760
        %288 = vmatmul.f32.gmra.mxu0 %v287
        %v289 = vpop.f32.mrf.mxu0
        %v290 = vadd.f32 0.0, %v289
        %291 = vdwg.mxu0
        %292 = vmatpush.msra.mxu0 0.0
        %293 = vmatpush.msra.mxu0 0.0
        %294 = vmatpush.msra.mxu0 0.0
        %295 = vmatpush.msra.mxu0 0.0
        %296 = vmatpush.msra.mxu0 0.0
        %297 = vmatpush.msra.mxu0 0.0
        %298 = vmatpush.msra.mxu0 0.0
        %299 = vmatpush.msra.mxu0 0.0
        %300 = vmatpush.msra.mxu0 0.0
        %301 = vmatpush.msra.mxu0 0.0
        %302 = vmatpush.msra.mxu0 0.0
        %303 = vmatpush.msra.mxu0 0.0
        %304 = vmatpush.msra.mxu0 0.0
        %305 = vmatpush.msra.mxu0 0.0
        %306 = vmatpush.msra.mxu0 0.0
        %v307 = vand.u32 %v238, 4294901760
        %v308 = vsub.f32 %v238, %v307
        %v309 = vand.u32 %v308, 4294901760
        %v310 = vsub.f32 %v308, %v309
        %v311 = vand.u32 %v310, 4294901760
        %312 = vmatpush.msra.mxu0 %v311
        %v313 = vand.u32 %v226, 4294901760
        %314 = vmatmul.f32.gmra.mxu0 %v313
        %v315 = vpop.f32.mrf.mxu0
        %v316 = vadd.f32 %v266, %v315
        %v317 = vand.u32 %v229, 4294901760
        %318 = vmatmul.f32.gmra.mxu0 %v317
        %v319 = vpop.f32.mrf.mxu0
        %v320 = vadd.f32 %v274, %v319
        %v321 = vand.u32 %v232, 4294901760
        %322 = vmatmul.f32.gmra.mxu0 %v321
        %v323 = vpop.f32.mrf.mxu0
        %v324 = vadd.f32 %v282, %v323
        %v325 = vand.u32 %v235, 4294901760
        %326 = vmatmul.f32.gmra.mxu0 %v325
        %v327 = vpop.f32.mrf.mxu0
        %v328 = vadd.f32 %v290, %v327
        %329 = vdwg.mxu0
        %330 = vmatpush.msra.mxu0 0.0
        %331 = vmatpush.msra.mxu0 0.0
        %332 = vmatpush.msra.mxu0 0.0
        %333 = vmatpush.msra.mxu0 0.0
        %334 = vmatpush.msra.mxu0 0.0
        %335 = vmatpush.msra.mxu0 0.0
        %336 = vmatpush.msra.mxu0 0.0
        %337 = vmatpush.msra.mxu0 0.0
        %338 = vmatpush.msra.mxu0 0.0
        %339 = vmatpush.msra.mxu0 0.0
        %340 = vmatpush.msra.mxu0 0.0
        %341 = vmatpush.msra.mxu0 0.0
        %342 = vmatpush.msra.mxu0 0.0
        %343 = vmatpush.msra.mxu0 0.0
        %344 = vmatpush.msra.mxu0 0.0
        %v345 = vand.u32 %v238, 4294901760
        %v346 = vsub.f32 %v238, %v345
        %347 = vmatpush.msra.mxu0 %v346
        %v348 = vand.u32 %v226, 4294901760
        %v349 = vsub.f32 %v226, %v348
        %350 = vmatmul.f32.gmra.mxu0 %v349
        %v351 = vpop.f32.mrf.mxu0
        %v352 = vadd.f32 %v316, %v351
        %v353 = vand.u32 %v229, 4294901760
        %v354 = vsub.f32 %v229, %v353
        %355 = vmatmul.f32.gmra.mxu0 %v354
        %v356 = vpop.f32.mrf.mxu0
        %v357 = vadd.f32 %v320, %v356
        %v358 = vand.u32 %v232, 4294901760
        %v359 = vsub.f32 %v232, %v358
        %360 = vmatmul.f32.gmra.mxu0 %v359
        %v361 = vpop.f32.mrf.mxu0
        %v362 = vadd.f32 %v324, %v361
        %v363 = vand.u32 %v235, 4294901760
        %v364 = vsub.f32 %v235, %v363
        %365 = vmatmul.f32.gmra.mxu0 %v364
        %v366 = vpop.f32.mrf.mxu0
        %v367 = vadd.f32 %v328, %v366
        %368 = vdwg.mxu0
        %369 = vmatpush.msra.mxu0 0.0
        %370 = vmatpush.msra.mxu0 0.0
        %371 = vmatpush.msra.mxu0 0.0
        %372 = vmatpush.msra.mxu0 0.0
        %373 = vmatpush.msra.mxu0 0.0
        %374 = vmatpush.msra.mxu0 0.0
        %375 = vmatpush.msra.mxu0 0.0
        %376 = vmatpush.msra.mxu0 0.0
        %377 = vmatpush.msra.mxu0 0.0
        %378 = vmatpush.msra.mxu0 0.0
        %379 = vmatpush.msra.mxu0 0.0
        %380 = vmatpush.msra.mxu0 0.0
        %381 = vmatpush.msra.mxu0 0.0
        %382 = vmatpush.msra.mxu0 0.0
        %383 = vmatpush.msra.mxu0 0.0
        %v384 = vand.u32 %v238, 4294901760
        %385 = vmatpush.msra.mxu0 %v384
        %v386 = vand.u32 %v226, 4294901760
        %v387 = vsub.f32 %v226, %v386
        %v388 = vand.u32 %v387, 4294901760
        %389 = vmatmul.f32.gmra.mxu0 %v388
        %v390 = vpop.f32.mrf.mxu0
        %v391 = vadd.f32 %v352, %v390
        %v392 = vand.u32 %v229, 4294901760
        %v393 = vsub.f32 %v229, %v392
        %v394 = vand.u32 %v393, 4294901760
        %395 = vmatmul.f32.gmra.mxu0 %v394
        %v396 = vpop.f32.mrf.mxu0
        %v397 = vadd.f32 %v357, %v396
        %v398 = vand.u32 %v232, 4294901760
        %v399 = vsub.f32 %v232, %v398
        %v400 = vand.u32 %v399, 4294901760
        %401 = vmatmul.f32.gmra.mxu0 %v400
        %v402 = vpop.f32.mrf.mxu0
        %v403 = vadd.f32 %v362, %v402
        %v404 = vand.u32 %v235, 4294901760
        %v405 = vsub.f32 %v235, %v404
        %v406 = vand.u32 %v405, 4294901760
        %407 = vmatmul.f32.gmra.mxu0 %v406
        %v408 = vpop.f32.mrf.mxu0
        %v409 = vadd.f32 %v367, %v408
        %410 = vdwg.mxu0
        %411 = vmatpush.msra.mxu0 0.0
        %412 = vmatpush.msra.mxu0 0.0
        %413 = vmatpush.msra.mxu0 0.0
        %414 = vmatpush.msra.mxu0 0.0
        %415 = vmatpush.msra.mxu0 0.0
        %416 = vmatpush.msra.mxu0 0.0
        %417 = vmatpush.msra.mxu0 0.0
        %418 = vmatpush.msra.mxu0 0.0
        %419 = vmatpush.msra.mxu0 0.0
        %420 = vmatpush.msra.mxu0 0.0
        %421 = vmatpush.msra.mxu0 0.0
        %422 = vmatpush.msra.mxu0 0.0
        %423 = vmatpush.msra.mxu0 0.0
        %424 = vmatpush.msra.mxu0 0.0
        %425 = vmatpush.msra.mxu0 0.0
        %v426 = vand.u32 %v238, 4294901760
        %v427 = vsub.f32 %v238, %v426
        %v428 = vand.u32 %v427, 4294901760
        %429 = vmatpush.msra.mxu0 %v428
        %v430 = vand.u32 %v226, 4294901760
        %431 = vmatmul.f32.gmra.mxu0 %v430
        %v432 = vpop.f32.mrf.mxu0
        %v433 = vadd.f32 %v391, %v432
        %v434 = vand.u32 %v229, 4294901760
        %435 = vmatmul.f32.gmra.mxu0 %v434
        %v436 = vpop.f32.mrf.mxu0
        %v437 = vadd.f32 %v397, %v436
        %v438 = vand.u32 %v232, 4294901760
        %439 = vmatmul.f32.gmra.mxu0 %v438
        %v440 = vpop.f32.mrf.mxu0
        %v441 = vadd.f32 %v403, %v440
        %v442 = vand.u32 %v235, 4294901760
        %443 = vmatmul.f32.gmra.mxu0 %v442
        %v444 = vpop.f32.mrf.mxu0
        %v445 = vadd.f32 %v409, %v444
        %446 = vdwg.mxu0
        %447 = vmatpush.msra.mxu0 0.0
        %448 = vmatpush.msra.mxu0 0.0
        %449 = vmatpush.msra.mxu0 0.0
        %450 = vmatpush.msra.mxu0 0.0
        %451 = vmatpush.msra.mxu0 0.0
        %452 = vmatpush.msra.mxu0 0.0
        %453 = vmatpush.msra.mxu0 0.0
        %454 = vmatpush.msra.mxu0 0.0
        %455 = vmatpush.msra.mxu0 0.0
        %456 = vmatpush.msra.mxu0 0.0
        %457 = vmatpush.msra.mxu0 0.0
        %458 = vmatpush.msra.mxu0 0.0
        %459 = vmatpush.msra.mxu0 0.0
        %460 = vmatpush.msra.mxu0 0.0
        %461 = vmatpush.msra.mxu0 0.0
        %v462 = vand.u32 %v238, 4294901760
        %463 = vmatpush.msra.mxu0 %v462
        %v464 = vand.u32 %v226, 4294901760
        %465 = vmatmul.f32.gmra.mxu0 %v464
        %v466 = vpop.f32.mrf.mxu0
        %v467 = vadd.f32 %v433, %v466
        %v468 = vand.u32 %v229, 4294901760
        %469 = vmatmul.f32.gmra.mxu0 %v468
        %v470 = vpop.f32.mrf.mxu0
        %v471 = vadd.f32 %v437, %v470
        %v472 = vand.u32 %v232, 4294901760
        %473 = vmatmul.f32.gmra.mxu0 %v472
        %v474 = vpop.f32.mrf.mxu0
        %v475 = vadd.f32 %v441, %v474
        %v476 = vand.u32 %v235, 4294901760
        %477 = vmatmul.f32.gmra.mxu0 %v476
        %v478 = vpop.f32.mrf.mxu0
        %v479 = vadd.f32 %v445, %v478
        %480 = vdwg.mxu0
        %481 = vmatpush.msra.mxu0 0.0
        %482 = vmatpush.msra.mxu0 0.0
        %483 = vmatpush.msra.mxu0 0.0
        %484 = vmatpush.msra.mxu0 0.0
        %485 = vmatpush.msra.mxu0 0.0
        %486 = vmatpush.msra.mxu0 0.0
        %487 = vmatpush.msra.mxu0 0.0
        %488 = vmatpush.msra.mxu0 0.0
        %489 = vmatpush.msra.mxu0 0.0
        %490 = vmatpush.msra.mxu0 0.0
        %491 = vmatpush.msra.mxu0 0.0
        %492 = vmatpush.msra.mxu0 0.0
        %493 = vmatpush.msra.mxu0 0.0
        %494 = vmatpush.msra.mxu0 0.0
        %495 = vmatpush.msra.mxu0 0.0
        %v496 = vand.u32 %v240, 4294901760
        %497 = vmatpush.msra.mxu0 %v496
        %v498 = vand.u32 %v226, 4294901760
        %v499 = vsub.f32 %v226, %v498
        %v500 = vand.u32 %v499, 4294901760
        %v501 = vsub.f32 %v499, %v500
        %v502 = vand.u32 %v501, 4294901760
        %503 = vmatmul.f32.gmra.mxu0 %v502
        %v504 = vpop.f32.mrf.mxu0
        %v505 = vadd.f32 0.0, %v504
        %v506 = vand.u32 %v229, 4294901760
        %v507 = vsub.f32 %v229, %v506
        %v508 = vand.u32 %v507, 4294901760
        %v509 = vsub.f32 %v507, %v508
        %v510 = vand.u32 %v509, 4294901760
        %511 = vmatmul.f32.gmra.mxu0 %v510
        %v512 = vpop.f32.mrf.mxu0
        %v513 = vadd.f32 0.0, %v512
        %v514 = vand.u32 %v232, 4294901760
        %v515 = vsub.f32 %v232, %v514
        %v516 = vand.u32 %v515, 4294901760
        %v517 = vsub.f32 %v515, %v516
        %v518 = vand.u32 %v517, 4294901760
        %519 = vmatmul.f32.gmra.mxu0 %v518
        %v520 = vpop.f32.mrf.mxu0
        %v521 = vadd.f32 0.0, %v520
        %v522 = vand.u32 %v235, 4294901760
        %v523 = vsub.f32 %v235, %v522
        %v524 = vand.u32 %v523, 4294901760
        %v525 = vsub.f32 %v523, %v524
        %v526 = vand.u32 %v525, 4294901760
        %527 = vmatmul.f32.gmra.mxu0 %v526
        %v528 = vpop.f32.mrf.mxu0
        %v529 = vadd.f32 0.0, %v528
        %530 = vdwg.mxu0
        %531 = vmatpush.msra.mxu0 0.0
        %532 = vmatpush.msra.mxu0 0.0
        %533 = vmatpush.msra.mxu0 0.0
        %534 = vmatpush.msra.mxu0 0.0
        %535 = vmatpush.msra.mxu0 0.0
        %536 = vmatpush.msra.mxu0 0.0
        %537 = vmatpush.msra.mxu0 0.0
        %538 = vmatpush.msra.mxu0 0.0
        %539 = vmatpush.msra.mxu0 0.0
        %540 = vmatpush.msra.mxu0 0.0
        %541 = vmatpush.msra.mxu0 0.0
        %542 = vmatpush.msra.mxu0 0.0
        %543 = vmatpush.msra.mxu0 0.0
        %544 = vmatpush.msra.mxu0 0.0
        %545 = vmatpush.msra.mxu0 0.0
        %v546 = vand.u32 %v240, 4294901760
        %v547 = vsub.f32 %v240, %v546
        %v548 = vand.u32 %v547, 4294901760
        %v549 = vsub.f32 %v547, %v548
        %v550 = vand.u32 %v549, 4294901760
        %551 = vmatpush.msra.mxu0 %v550
        %v552 = vand.u32 %v226, 4294901760
        %553 = vmatmul.f32.gmra.mxu0 %v552
        %v554 = vpop.f32.mrf.mxu0
        %v555 = vadd.f32 %v505, %v554
        %v556 = vand.u32 %v229, 4294901760
        %557 = vmatmul.f32.gmra.mxu0 %v556
        %v558 = vpop.f32.mrf.mxu0
        %v559 = vadd.f32 %v513, %v558
        %v560 = vand.u32 %v232, 4294901760
        %561 = vmatmul.f32.gmra.mxu0 %v560
        %v562 = vpop.f32.mrf.mxu0
        %v563 = vadd.f32 %v521, %v562
        %v564 = vand.u32 %v235, 4294901760
        %565 = vmatmul.f32.gmra.mxu0 %v564
        %v566 = vpop.f32.mrf.mxu0
        %v567 = vadd.f32 %v529, %v566
        %568 = vdwg.mxu0
        %569 = vmatpush.msra.mxu0 0.0
        %570 = vmatpush.msra.mxu0 0.0
        %571 = vmatpush.msra.mxu0 0.0
        %572 = vmatpush.msra.mxu0 0.0
        %573 = vmatpush.msra.mxu0 0.0
        %574 = vmatpush.msra.mxu0 0.0
        %575 = vmatpush.msra.mxu0 0.0
        %576 = vmatpush.msra.mxu0 0.0
        %577 = vmatpush.msra.mxu0 0.0
        %578 = vmatpush.msra.mxu0 0.0
        %579 = vmatpush.msra.mxu0 0.0
        %580 = vmatpush.msra.mxu0 0.0
        %581 = vmatpush.msra.mxu0 0.0
        %582 = vmatpush.msra.mxu0 0.0
        %583 = vmatpush.msra.mxu0 0.0
        %v584 = vand.u32 %v240, 4294901760
        %v585 = vsub.f32 %v240, %v584
        %586 = vmatpush.msra.mxu0 %v585
        %v587 = vand.u32 %v226, 4294901760
        %v588 = vsub.f32 %v226, %v587
        %589 = vmatmul.f32.gmra.mxu0 %v588
        %v590 = vpop.f32.mrf.mxu0
        %v591 = vadd.f32 %v555, %v590
        %v592 = vand.u32 %v229, 4294901760
        %v593 = vsub.f32 %v229, %v592
        %594 = vmatmul.f32.gmra.mxu0 %v593
        %v595 = vpop.f32.mrf.mxu0
        %v596 = vadd.f32 %v559, %v595
        %v597 = vand.u32 %v232, 4294901760
        %v598 = vsub.f32 %v232, %v597
        %599 = vmatmul.f32.gmra.mxu0 %v598
        %v600 = vpop.f32.mrf.mxu0
        %v601 = vadd.f32 %v563, %v600
        %v602 = vand.u32 %v235, 4294901760
        %v603 = vsub.f32 %v235, %v602
        %604 = vmatmul.f32.gmra.mxu0 %v603
        %v605 = vpop.f32.mrf.mxu0
        %v606 = vadd.f32 %v567, %v605
        %607 = vdwg.mxu0
        %608 = vmatpush.msra.mxu0 0.0
        %609 = vmatpush.msra.mxu0 0.0
        %610 = vmatpush.msra.mxu0 0.0
        %611 = vmatpush.msra.mxu0 0.0
        %612 = vmatpush.msra.mxu0 0.0
        %613 = vmatpush.msra.mxu0 0.0
        %614 = vmatpush.msra.mxu0 0.0
        %615 = vmatpush.msra.mxu0 0.0
        %616 = vmatpush.msra.mxu0 0.0
        %617 = vmatpush.msra.mxu0 0.0
        %618 = vmatpush.msra.mxu0 0.0
        %619 = vmatpush.msra.mxu0 0.0
        %620 = vmatpush.msra.mxu0 0.0
        %621 = vmatpush.msra.mxu0 0.0
        %622 = vmatpush.msra.mxu0 0.0
        %v623 = vand.u32 %v240, 4294901760
        %624 = vmatpush.msra.mxu0 %v623
        %v625 = vand.u32 %v226, 4294901760
        %v626 = vsub.f32 %v226, %v625
        %v627 = vand.u32 %v626, 4294901760
        %628 = vmatmul.f32.gmra.mxu0 %v627
        %v629 = vpop.f32.mrf.mxu0
        %v630 = vadd.f32 %v591, %v629
        %v631 = vand.u32 %v229, 4294901760
        %v632 = vsub.f32 %v229, %v631
        %v633 = vand.u32 %v632, 4294901760
        %634 = vmatmul.f32.gmra.mxu0 %v633
        %v635 = vpop.f32.mrf.mxu0
        %v636 = vadd.f32 %v596, %v635
        %v637 = vand.u32 %v232, 4294901760
        %v638 = vsub.f32 %v232, %v637
        %v639 = vand.u32 %v638, 4294901760
        %640 = vmatmul.f32.gmra.mxu0 %v639
        %v641 = vpop.f32.mrf.mxu0
        %v642 = vadd.f32 %v601, %v641
        %v643 = vand.u32 %v235, 4294901760
        %v644 = vsub.f32 %v235, %v643
        %v645 = vand.u32 %v644, 4294901760
        %646 = vmatmul.f32.gmra.mxu0 %v645
        %v647 = vpop.f32.mrf.mxu0
        %v648 = vadd.f32 %v606, %v647
        %649 = vdwg.mxu0
        %650 = vmatpush.msra.mxu0 0.0
        %651 = vmatpush.msra.mxu0 0.0
        %652 = vmatpush.msra.mxu0 0.0
        %653 = vmatpush.msra.mxu0 0.0
        %654 = vmatpush.msra.mxu0 0.0
        %655 = vmatpush.msra.mxu0 0.0
        %656 = vmatpush.msra.mxu0 0.0
        %657 = vmatpush.msra.mxu0 0.0
        %658 = vmatpush.msra.mxu0 0.0
        %659 = vmatpush.msra.mxu0 0.0
        %660 = vmatpush.msra.mxu0 0.0
        %661 = vmatpush.msra.mxu0 0.0
        %662 = vmatpush.msra.mxu0 0.0
        %663 = vmatpush.msra.mxu0 0.0
        %664 = vmatpush.msra.mxu0 0.0
        %v665 = vand.u32 %v240, 4294901760
        %v666 = vsub.f32 %v240, %v665
        %v667 = vand.u32 %v666, 4294901760
        %668 = vmatpush.msra.mxu0 %v667
        %v669 = vand.u32 %v226, 4294901760
        %670 = vmatmul.f32.gmra.mxu0 %v669
        %v671 = vpop.f32.mrf.mxu0
        %v672 = vadd.f32 %v630, %v671
        %v673 = vand.u32 %v229, 4294901760
        %674 = vmatmul.f32.gmra.mxu0 %v673
        %v675 = vpop.f32.mrf.mxu0
        %v676 = vadd.f32 %v636, %v675
        %v677 = vand.u32 %v232, 4294901760
        %678 = vmatmul.f32.gmra.mxu0 %v677
        %v679 = vpop.f32.mrf.mxu0
        %v680 = vadd.f32 %v642, %v679
        %v681 = vand.u32 %v235, 4294901760
        %682 = vmatmul.f32.gmra.mxu0 %v681
        %v683 = vpop.f32.mrf.mxu0
        %v684 = vadd.f32 %v648, %v683
        %685 = vdwg.mxu0
        %686 = vmatpush.msra.mxu0 0.0
        %687 = vmatpush.msra.mxu0 0.0
        %688 = vmatpush.msra.mxu0 0.0
        %689 = vmatpush.msra.mxu0 0.0
        %690 = vmatpush.msra.mxu0 0.0
        %691 = vmatpush.msra.mxu0 0.0
        %692 = vmatpush.msra.mxu0 0.0
        %693 = vmatpush.msra.mxu0 0.0
        %694 = vmatpush.msra.mxu0 0.0
        %695 = vmatpush.msra.mxu0 0.0
        %696 = vmatpush.msra.mxu0 0.0
        %697 = vmatpush.msra.mxu0 0.0
        %698 = vmatpush.msra.mxu0 0.0
        %699 = vmatpush.msra.mxu0 0.0
        %700 = vmatpush.msra.mxu0 0.0
        %v701 = vand.u32 %v240, 4294901760
        %702 = vmatpush.msra.mxu0 %v701
        %v703 = vand.u32 %v226, 4294901760
        %704 = vmatmul.f32.gmra.mxu0 %v703
        %v705 = vpop.f32.mrf.mxu0
        %v706 = vadd.f32 %v672, %v705
        %v707 = vand.u32 %v229, 4294901760
        %708 = vmatmul.f32.gmra.mxu0 %v707
        %v709 = vpop.f32.mrf.mxu0
        %v710 = vadd.f32 %v676, %v709
        %v711 = vand.u32 %v232, 4294901760
        %712 = vmatmul.f32.gmra.mxu0 %v711
        %v713 = vpop.f32.mrf.mxu0
        %v714 = vadd.f32 %v680, %v713
        %v715 = vand.u32 %v235, 4294901760
        %716 = vmatmul.f32.gmra.mxu0 %v715
        %v717 = vpop.f32.mrf.mxu0
        %v718 = vadd.f32 %v684, %v717
        %719 = vdwg.mxu0
        %p720 = scmp.eq.s32.totalorder %s24, 0
        // Predicated region
        $region29: #{tpu_custom_call.1} parent=27 // pred_check
          %p721 = pneg %p720
        $region30: #{tpu_custom_call.1} parent=27 // pred_check_branch
          %723 = sbr.rel (%p721) target = $region32
        $region31: #{tpu_custom_call.1} parent=27 // pred_region
          %p724 = scmp.eq.s32.totalorder %s25, 0
          // Predicated region
          $region33: #{tpu_custom_call.1} parent=31 // pred_check
            %p725 = pneg %p724
          $region34: #{tpu_custom_call.1} parent=31 // pred_check_branch
            %727 = sbr.rel (%p725) target = $region36
          $region35: #{tpu_custom_call.1} parent=31 // pred_region
            %v728 = vadd.f32 %v467, %v706
            %729 = vadd.xlane.f32.xlu0 %v728
            %v730 = vpop.xlane.xlu0 %729
            %v731 = vadd.f32 %v471, %v710
            %732 = vadd.xlane.f32.xlu0 %v731
            %v733 = vpop.xlane.xlu0 %732
            %v734 = vadd.f32 %v475, %v714
            %735 = vadd.xlane.f32.xlu0 %v734
            %v736 = vpop.xlane.xlu0 %735
            %v737 = vadd.f32 %v479, %v718
            %738 = vadd.xlane.f32.xlu0 %v737
            %v739 = vpop.xlane.xlu0 %738
            %v740 = vadd.f32 %v730, %v733
            %v741 = vadd.f32 %v740, %v736
            %v742 = vadd.f32 %v741, %v739
            %v743 = vmul.f32 %v742, 0.0009765625
            %vm744 = vcmask 7168
            %745 = vst.msk [vmem:[#allocation2] sm:$0xff] %vm744, %v743
            %746 = vst.msk [vmem:[#allocation3] sm:$0xff] %vm744, 0.0
            %747 = vst.msk [vmem:[#allocation4] sm:$0xff] %vm744, 0.0
          $region36: #{tpu_custom_call.1} parent=31 // pred_fallthru
            _
          %v748 = vld [vmem:[#allocation2] sm:$0xff]
          %750 = vset.pattern.permute.xlu0 0
          %751 = vperm.xlu0 %750, %v748
          %v752 = vpop.permute.xlu0 %751
          %v754 = vsub.f32 %v467, %v752
          %v755 = vsub.f32 %v706, %v752
          %v756 = vsub.f32 %v471, %v752
          %v757 = vsub.f32 %v710, %v752
          %v758 = vsub.f32 %v475, %v752
          %v759 = vsub.f32 %v714, %v752
          %v760 = vsub.f32 %v479, %v752
          %v761 = vsub.f32 %v718, %v752
          %v762 = vld [vmem:[#allocation3] sm:$0xff]
          %v763 = vadd.f32 %v754, %v755
          %764 = vadd.xlane.f32.xlu0 %v763
          %v765 = vpop.xlane.xlu0 %764
          %v766 = vadd.f32 %v756, %v757
          %767 = vadd.xlane.f32.xlu0 %v766
          %v768 = vpop.xlane.xlu0 %767
          %v769 = vadd.f32 %v758, %v759
          %770 = vadd.xlane.f32.xlu0 %v769
          %v771 = vpop.xlane.xlu0 %770
          %v772 = vadd.f32 %v760, %v761
          %773 = vadd.xlane.f32.xlu0 %v772
          %v774 = vpop.xlane.xlu0 %773
          %v775 = vadd.f32 %v765, %v768
          %v776 = vadd.f32 %v775, %v771
          %v777 = vadd.f32 %v776, %v774
          %v778 = vadd.f32 %v762, %v777
          %vm779 = vcmask 7168
          %780 = vst.msk [vmem:[#allocation3] sm:$0xff] %vm779, %v778
          %v781 = vld [vmem:[#allocation4] sm:$0xff]
          %v782 = vmul.f32 %v754, %v754
          %v783 = vmul.f32 %v755, %v755
          %v784 = vmul.f32 %v756, %v756
          %v785 = vmul.f32 %v757, %v757
          %v786 = vmul.f32 %v758, %v758
          %v787 = vmul.f32 %v759, %v759
          %v788 = vmul.f32 %v760, %v760
          %v789 = vmul.f32 %v761, %v761
          %v790 = vadd.f32 %v782, %v783
          %791 = vadd.xlane.f32.xlu0 %v790
          %v792 = vpop.xlane.xlu0 %791
          %v793 = vadd.f32 %v784, %v785
          %794 = vadd.xlane.f32.xlu0 %v793
          %v795 = vpop.xlane.xlu0 %794
          %v796 = vadd.f32 %v786, %v787
          %797 = vadd.xlane.f32.xlu0 %v796
          %v798 = vpop.xlane.xlu0 %797
          %v799 = vadd.f32 %v788, %v789
          %800 = vadd.xlane.f32.xlu0 %v799
          %v801 = vpop.xlane.xlu0 %800
          %v802 = vadd.f32 %v792, %v795
          %v803 = vadd.f32 %v802, %v798
          %v804 = vadd.f32 %v803, %v801
          %v805 = vadd.f32 %v781, %v804
          %806 = vst.msk [vmem:[#allocation4] sm:$0xff] %vm779, %v805
        $region32: #{tpu_custom_call.1} parent=27 // pred_fallthru
          _
        %p807 = scmp.eq.s32.totalorder %s24, 1
        // Predicated region
        $region37: #{tpu_custom_call.1} parent=27 // pred_check
          %p808 = pneg %p807
        $region38: #{tpu_custom_call.1} parent=27 // pred_check_branch
          %810 = sbr.rel (%p808) target = $region40
        $region39: #{tpu_custom_call.1} parent=27 // pred_region
          %v811 = vld [vmem:[#allocation3] sm:$0xff]
          %v812 = vmul.f32 %v811, 0.0009765625
          %v813 = vld [vmem:[#allocation2] sm:$0xff]
          %v814 = vadd.f32 %v813, %v812
          %v815 = vld [vmem:[#allocation4] sm:$0xff]
          %v816 = vmul.f32 %v815, 0.0009765625
          %v817 = vmul.f32 %v812, %v812
          %v818 = vsub.f32 %v816, %v817
          %v819 = vadd.f32 %v818, 1e-05
          %v820 = vrsqrt.pop %v819
          %v821 = vmul.f32 %v820, %v819
          %v822 = vmul.f32 %v821, %v820
          %v823 = vmul.f32 0.5, %v822
          %v824 = vsub.f32 1.5, %v823
          %v825 = vmul.f32 %v820, %v824
          %vm826 = vweird.f32 %v819
          %vm827 = vweird.f32 %v820
          %vm828 = vmor %vm826, %vm827
          %v829 = vsel %vm828, %v820, %v825
          %831 = vset.pattern.permute.xlu0 0
          %832 = vperm.xlu0 %831, %v814
          %v833 = vpop.permute.xlu0 %832
          %v835 = vsub.f32 %v467, %v833
          %v836 = vsub.f32 %v706, %v833
          %v837 = vsub.f32 %v471, %v833
          %v838 = vsub.f32 %v710, %v833
          %v839 = vsub.f32 %v475, %v833
          %v840 = vsub.f32 %v714, %v833
          %v841 = vsub.f32 %v479, %v833
          %v842 = vsub.f32 %v718, %v833
          %844 = vset.pattern.permute.xlu0 0
          %845 = vperm.xlu0 %844, %v829
          %v846 = vpop.permute.xlu0 %845
          %v848 = vmul.f32 %v835, %v846
          %v849 = vmul.f32 %v836, %v846
          %v850 = vmul.f32 %v837, %v846
          %v851 = vmul.f32 %v838, %v846
          %v852 = vmul.f32 %v839, %v846
          %v853 = vmul.f32 %v840, %v846
          %v854 = vmul.f32 %v841, %v846
          %v855 = vmul.f32 %v842, %v846
          %vm856 = vcmp.ge.f32.partialorder %v848, 0.0
          %vm857 = vcmp.ge.f32.partialorder %v849, 0.0
          %vm858 = vcmp.ge.f32.partialorder %v850, 0.0
          %vm859 = vcmp.ge.f32.partialorder %v851, 0.0
          %vm860 = vcmp.ge.f32.partialorder %v852, 0.0
          %vm861 = vcmp.ge.f32.partialorder %v853, 0.0
          %vm862 = vcmp.ge.f32.partialorder %v854, 0.0
          %vm863 = vcmp.ge.f32.partialorder %v855, 0.0
          %v864 = vmul.f32 %v848, 0.2
          %v865 = vmul.f32 %v849, 0.2
          %v866 = vmul.f32 %v850, 0.2
          %v867 = vmul.f32 %v851, 0.2
          %v868 = vmul.f32 %v852, 0.2
          %v869 = vmul.f32 %v853, 0.2
          %v870 = vmul.f32 %v854, 0.2
          %v871 = vmul.f32 %v855, 0.2
          %v872 = vsel %vm856, %v848, %v864
          %v873 = vsel %vm857, %v849, %v865
          %v874 = vsel %vm858, %v850, %v866
          %v875 = vsel %vm859, %v851, %v867
          %v876 = vsel %vm860, %v852, %v868
          %v877 = vsel %vm861, %v853, %v869
          %v878 = vsel %vm862, %v854, %v870
          %v879 = vsel %vm863, %v855, %v871
          %880 = vst [vmem:[%s195] sm:$0xff] %v872
          %881 = vst [vmem:[%s195 + $0x8] sm:$0xff] %v873
          %882 = vst [vmem:[%s195 + $0x10] sm:$0xff] %v874
          %883 = vst [vmem:[%s195 + $0x18] sm:$0xff] %v875
          %884 = vst [vmem:[%s195 + $0x20] sm:$0xff] %v876
          %885 = vst [vmem:[%s195 + $0x28] sm:$0xff] %v877
          %886 = vst [vmem:[%s195 + $0x30] sm:$0xff] %v878
          %887 = vst [vmem:[%s195 + $0x38] sm:$0xff] %v879
        $region40: #{tpu_custom_call.1} parent=27 // pred_fallthru
          _
        %s888 = sand.u32 %s110, 1
        %s889 = scalar_lea.sflag [#allocation6], %s888
        %s890 = sand.u32 %s110, 1
        %s891 = smul.addr %s890, 64
        %s892 = scalar_lea.vmem [#allocation5], %s891
        // Predicated region
        $region41: #{tpu_custom_call.1} parent=27 // pred_check
          %p893 = pneg %p120
        $region42: #{tpu_custom_call.1} parent=27 // pred_check_branch
          %895 = sbr.rel (%p893) target = $region44
        $region43: #{tpu_custom_call.1} parent=27 // pred_region
          %s896 = smul.u32 %s24, %s25
          %s897 = smul.u32 4, %s23
          %s898 = smul.u32 2, %s896
          %900 = vsyncadd %s889, 0
          %s901 = smul.addr %s897, 2
          %s902 = sadd.s32 %s898, %s901
          %s903 = smul.addr %s22, 8
          %s904 = sadd.s32 %s902, %s903
          %s905 = smul.addr %s904, 8
          %s906 = scalar_lea.hbm %s2, %s905
          %s907 = sshll.u32 %s892, 4
          %s908 = int_to_ptr.vmem [resolvable:$true] %s907
          %s909 = sshll.u32 %s906, 4
          %s910 = int_to_ptr.hbm [resolvable:$true] %s909
          %915 = dma.vmem_to_hbm [thread:$0]  %s908, 1024, %s910, %s889, 256, 256, 16
        $region44: #{tpu_custom_call.1} parent=27 // pred_fallthru
          _
      $region28: #{tpu_custom_call.1} parent=5 // pred_fallthru
        _
      %p916 = scmp.le.s32.totalorder 2, %s11
      // Predicated region
      $region45: #{tpu_custom_call.1} parent=5 // pred_check
        %p917 = pneg %p916
      $region46: #{tpu_custom_call.1} parent=5 // pred_check_branch
        %919 = sbr.rel (%p917) target = $region48
      $region47: #{tpu_custom_call.1} parent=5 // pred_region
        %s920 = ssub.s32 %s11, 2
        // Predicated region
        $region49: #{tpu_custom_call.1} parent=47 // pred_check
          %p921 = pneg %p126
        $region50: #{tpu_custom_call.1} parent=47 // pred_check_branch
          %923 = sbr.rel (%p921) target = $region52
        $region51: #{tpu_custom_call.1} parent=47 // pred_region
          %s924 = sand.u32 %s111, 1
          %s925 = scalar_lea.sflag [#allocation6], %s924
          %s926 = sand.u32 %s111, 1
          %s927 = smul.addr %s926, 64
          %s928 = scalar_lea.vmem [#allocation5], %s927
          %930 = dma.done %s925, 1024
        $region52: #{tpu_custom_call.1} parent=47 // pred_fallthru
          _
      $region48: #{tpu_custom_call.1} parent=5 // pred_fallthru
        _
    $region6: #{tpu_custom_call.1} parent=1 // loop_footer
      %s15 = sadd.s32 1, %s11
    $region7: #{tpu_custom_call.1} parent=1 // loop_footer_branch
      %10 = sbr.rel target = $region3
    $region8: #{tpu_custom_call.1} parent=1 // loop_exit
      _
    %931 = vsyncpa [#allocation6], 1
    %s932 = scalar_lea.sflag [#allocation6], 1
    %933 = vsyncpa %s932, 1

</llo_original>
